<compile_context>
chip_gen: v6e
topology: v6e:2x2x1
jax: 0.10.0
libtpu: 0.0.40
codegen_flags: <defaults>
</compile_context>

<pallas_src>
import jax
import jax.numpy as jnp
from jax.experimental import pallas as pl
from jax.experimental.pallas import tpu as pltpu

LANES = 128          # lane width of a vreg
SUBLANES = 8         # sublane depth of a vreg (f32)
BLOCK_ROWS = 256     # rows per grid step: 256 x 128 f32 = 128 KiB per buffer


def linear_kernel(w_ref, b_ref, x_ref, o_ref):
    # w_ref / b_ref: (1,) f32 scalars in SMEM.
    # x_ref / o_ref: (BLOCK_ROWS, 128) f32 tiles in VMEM.
    w = w_ref[0]
    b = b_ref[0]
    # Pure VPU elementwise multiply-add over a full vreg-aligned tile.
    o_ref[...] = x_ref[...] * w + b


def linear_forward(x, w, b):
    """x: (N, 1) f32, w: (1, 1) f32 (W^T), b: (1,) f32  ->  (N, 1) f32."""
    n, in_f = x.shape
    out_f = w.shape[1]
    assert in_f == 1 and out_f == 1, "nn.Linear(1, 1) forward"

    # ---- layout plumbing in the wrapper (free) ----
    # Flatten the batch and pad it up to a whole number of (BLOCK_ROWS, 128) tiles so
    # every vector load/store in the kernel is dense and unmasked.
    x_flat = x.reshape(n)
    per_block = BLOCK_ROWS * LANES
    n_pad = pl.cdiv(max(n, 1), per_block) * per_block
    x_padded = jnp.zeros((n_pad,), dtype=x.dtype).at[:n].set(x_flat)
    x_slab = x_padded.reshape(n_pad // LANES, LANES)          # (rows, 128), rows % BLOCK_ROWS == 0

    w_s = w.reshape(1)
    b_s = b.reshape(1)

    rows = x_slab.shape[0]
    grid = (rows // BLOCK_ROWS,)

    y_slab = pl.pallas_call(
        linear_kernel,
        out_shape=jax.ShapeDtypeStruct((rows, LANES), x.dtype),
        grid=grid,
        in_specs=[
            pl.BlockSpec(memory_space=pltpu.MemorySpace.SMEM),              # w scalar
            pl.BlockSpec(memory_space=pltpu.MemorySpace.SMEM),              # b scalar
            pl.BlockSpec((BLOCK_ROWS, LANES), lambda i: (i, 0)),            # x tile
        ],
        out_specs=pl.BlockSpec((BLOCK_ROWS, LANES), lambda i: (i, 0)),      # y tile
        compiler_params=pltpu.CompilerParams(
            dimension_semantics=("parallel",),
        ),
    )(w_s, b_s, x_slab)

    return y_slab.reshape(n_pad)[:n].reshape(n, out_f)


if __name__ == "__main__":
    key = jax.random.PRNGKey(0)
    kx, kw, kb = jax.random.split(key, 3)

    N, IN_F, OUT_F = 8, 1, 1
    x = jax.random.normal(kx, (N, IN_F), dtype=jnp.float32)

    # Deterministic parameter init mimicking nn.Linear(1, 1) shapes:
    # weight (out, in) -> stored transposed as (in, out); bias (out,).
    w_t = jax.random.uniform(kw, (IN_F, OUT_F), dtype=jnp.float32, minval=-1.0, maxval=1.0)
    b = jax.random.uniform(kb, (OUT_F,), dtype=jnp.float32, minval=-1.0, maxval=1.0)

    y = linear_forward(x, w_t, b)
    jax.block_until_ready(y)

    # Reference check against plain JAX.
    y_ref = x @ w_t + b[None, :]
    assert y.shape == (N, OUT_F)
    assert jnp.allclose(y, y_ref, atol=1e-5, rtol=1e-5)
    print("KERNEL_OK")
</pallas_src>

<mosaic_0001>
module attributes {stable_mosaic.version = 11 : i64} {
  func.func @linear_kernel(%arg0: i32, %arg1: memref<1xf32, #tpu.memory_space<smem>>, %arg2: memref<1xf32, #tpu.memory_space<smem>>, %arg3: memref<256x128xf32, #tpu.memory_space<vmem>>, %arg4: memref<256x128xf32, #tpu.memory_space<vmem>>) attributes {dimension_semantics = [#tpu.dimension_semantics<parallel>], iteration_bounds = array<i64: 1>, scalar_prefetch = 0 : i64, scratch_operands = 0 : i64, tpu.core_type = #tpu.core_type<tc>, window_params = [{transform_indices = @transform_0, window_bounds = array<i64: 1>}, {transform_indices = @transform_1, window_bounds = array<i64: 1>}, {transform_indices = @transform_2, window_bounds = array<i64: 256, 128>}, {transform_indices = @transform_3, window_bounds = array<i64: 256, 128>}]} {
    %c0 = arith.constant 0 : index
    %0 = memref.load %arg1[%c0] : memref<1xf32, #tpu.memory_space<smem>>
    %c0_0 = arith.constant 0 : index
    %1 = memref.load %arg2[%c0_0] : memref<1xf32, #tpu.memory_space<smem>>
    %c0_1 = arith.constant 0 : index
    %c0_2 = arith.constant 0 : index
    %2 = vector.load %arg3[%c0_1, %c0_2] : memref<256x128xf32, #tpu.memory_space<vmem>>, vector<256x128xf32>
    %3 = vector.broadcast %0 : f32 to vector<256x128xf32>
    %4 = arith.mulf %2, %3 : vector<256x128xf32>
    %5 = vector.broadcast %1 : f32 to vector<256x128xf32>
    %6 = arith.addf %4, %5 : vector<256x128xf32>
    %c0_3 = arith.constant 0 : index
    %c0_4 = arith.constant 0 : index
    %7 = vector.load %arg4[%c0_3, %c0_4] : memref<256x128xf32, #tpu.memory_space<vmem>>, vector<256x128xf32>
    tpu.vector_store %arg4[%c0_3, %c0_4], %6 {strides = array<i32>} : memref<256x128xf32, #tpu.memory_space<vmem>>, vector<256x128xf32>,
    return
  }
  func.func @transform_0(%arg0: i32) -> i32 {
    %c0_i32 = arith.constant 0 : i32
    %c0_i32_0 = arith.constant 0 : i32
    return %c0_i32 : i32
  }
  func.func @transform_1(%arg0: i32) -> i32 {
    %c0_i32 = arith.constant 0 : i32
    %c0_i32_0 = arith.constant 0 : i32
    return %c0_i32 : i32
  }
  func.func @transform_2(%arg0: i32) -> (i32, i32) {
    %c0_i32 = arith.constant 0 : i32
    %c0_i32_0 = arith.constant 0 : i32
    return %arg0, %c0_i32 : i32, i32
  }
  func.func @transform_3(%arg0: i32) -> (i32, i32) {
    %c0_i32 = arith.constant 0 : i32
    %c0_i32_0 = arith.constant 0 : i32
    return %arg0, %c0_i32 : i32, i32
  }
}

</mosaic_0001>

<llo_original>
// kernel: tpu_custom_call.1
$region0: #{tpu_custom_call.1}
  #allocation0 [shape = 'u32[]', space=smem, size = 0x4, offset = 0x4, fixed_abs, tag = 'smem constant byte address 0x4 - core index']
  #allocation1 [shape = 'u32[144,128]{1,0:T(1,128)}', space=vmem, size = 0x12000, scoped, tag = 'internal scratch']
  #allocation2 [shape = 'f32[1]{0:T(128)S(6)}', space=smem, size = 0x200, scoped, tag = 'scoped memory for tpu_custom_call.1']
  #allocation3 [shape = 'f32[1]{0:T(128)S(6)}', space=smem, size = 0x200, scoped, tag = 'scoped memory for tpu_custom_call.1']
  %s0 = inlined_call_operand.<no memory space> [shape: f32[1], index: 0, kind: input, shape index: {}]
  %s1 = inlined_call_operand.<no memory space> [shape: f32[1], index: 1, kind: input, shape index: {}]
  %s2 = inlined_call_operand.hbm [shape: f32[256,128], index: 2, kind: input, shape index: {}]
  %s3 = inlined_call_operand.hbm [shape: f32[256,128], index: 3, kind: output, shape index: {}]
  %s4 = sld [smem:[#allocation0]]
  $region26: #{tpu_custom_call.1} parent=0
    _
  %s6 = ssub.s32 1, %s4
  %s7 = scalar_select 0, %s6, %s4
  %8 = sst [smem:[#allocation2]] %s0
  %9 = sst [smem:[#allocation3]] %s1
  $region1: #{tpu_custom_call.1} parent=0
    #allocation4 [shape = 'u8[131072]{0}', space=vmem, size = 0x20000, scoped, tag = 'input window, operand 2, single buffered']
    #allocation5 [shape = 's32[1]{0}', space=sflag, size = 0x4, scoped, tag = 'scoped memory for tpu_custom_call.1']
    #allocation6 [shape = 's32[1]{0}', space=sflag, size = 0x4, scoped, tag = 'scoped memory for tpu_custom_call.1']
    #allocation7 [shape = 'u8[131072]{0}', space=vmem, size = 0x20000, scoped, tag = 'output window, operand 0, single buffered']
    %10 = vsyncpa [#allocation5], 0
    %11 = vsyncpa [#allocation6], 0
    // Predicated region
    $region2: #{tpu_custom_call.1} parent=1 // pred_check
      _
    $region3: #{tpu_custom_call.1} parent=1 // pred_check_branch
      %13 = sbr.rel (0) target = $region5
    $region4: #{tpu_custom_call.1} parent=1 // pred_region
      _
    $region5: #{tpu_custom_call.1} parent=1 // pred_fallthru
      _
    // Predicated region
    $region6: #{tpu_custom_call.1} parent=1 // pred_check
      _
    $region7: #{tpu_custom_call.1} parent=1 // pred_check_branch
      %15 = sbr.rel (0) target = $region9
    $region8: #{tpu_custom_call.1} parent=1 // pred_region
      _
    $region9: #{tpu_custom_call.1} parent=1 // pred_fallthru
      _
    // Predicated region
    $region10: #{tpu_custom_call.1} parent=1 // pred_check
      _
    $region11: #{tpu_custom_call.1} parent=1 // pred_check_branch
      %17 = sbr.rel (0) target = $region13
    $region12: #{tpu_custom_call.1} parent=1 // pred_region
      %s19 = ssub.s32 4096, 4096
      %20 = vsyncadd [#allocation5], %s19
      %s21 = sshll.u32 [#allocation4], 4
      %s22 = int_to_ptr.vmem [resolvable:$true] %s21
      %27 = dma.hbm_to_vmem [thread:$0]  %s2, 4096, %s22, [#allocation5], 128, 128, 8
    $region13: #{tpu_custom_call.1} parent=1 // pred_fallthru
      _
    // Predicated region
    $region14: #{tpu_custom_call.1} parent=1 // pred_check
      _
    $region15: #{tpu_custom_call.1} parent=1 // pred_check_branch
      %29 = sbr.rel (0) target = $region17
    $region16: #{tpu_custom_call.1} parent=1 // pred_region
      %30 = dma.done [#allocation5], 4096
    $region17: #{tpu_custom_call.1} parent=1 // pred_fallthru
      _
    %s31 = sld [smem:[#allocation2]]
    %s32 = sld [smem:[#allocation3]]
    %v33 = vld [vmem:[#allocation4] sm:$0xff]
    %v34 = vld [vmem:[#allocation4 + $0x8] sm:$0xff]
    %v35 = vld [vmem:[#allocation4 + $0x10] sm:$0xff]
    %v36 = vld [vmem:[#allocation4 + $0x18] sm:$0xff]
    %v37 = vld [vmem:[#allocation4 + $0x20] sm:$0xff]
    %v38 = vld [vmem:[#allocation4 + $0x28] sm:$0xff]
    %v39 = vld [vmem:[#allocation4 + $0x30] sm:$0xff]
    %v40 = vld [vmem:[#allocation4 + $0x38] sm:$0xff]
    %v41 = vld [vmem:[#allocation4 + $0x40] sm:$0xff]
    %v42 = vld [vmem:[#allocation4 + $0x48] sm:$0xff]
    %v43 = vld [vmem:[#allocation4 + $0x50] sm:$0xff]
    %v44 = vld [vmem:[#allocation4 + $0x58] sm:$0xff]
    %v45 = vld [vmem:[#allocation4 + $0x60] sm:$0xff]
    %v46 = vld [vmem:[#allocation4 + $0x68] sm:$0xff]
    %v47 = vld [vmem:[#allocation4 + $0x70] sm:$0xff]
    %v48 = vld [vmem:[#allocation4 + $0x78] sm:$0xff]
    %v49 = vld [vmem:[#allocation4 + $0x80] sm:$0xff]
    %v50 = vld [vmem:[#allocation4 + $0x88] sm:$0xff]
    %v51 = vld [vmem:[#allocation4 + $0x90] sm:$0xff]
    %v52 = vld [vmem:[#allocation4 + $0x98] sm:$0xff]
    %v53 = vld [vmem:[#allocation4 + $0xa0] sm:$0xff]
    %v54 = vld [vmem:[#allocation4 + $0xa8] sm:$0xff]
    %v55 = vld [vmem:[#allocation4 + $0xb0] sm:$0xff]
    %v56 = vld [vmem:[#allocation4 + $0xb8] sm:$0xff]
    %v57 = vld [vmem:[#allocation4 + $0xc0] sm:$0xff]
    %v58 = vld [vmem:[#allocation4 + $0xc8] sm:$0xff]
    %v59 = vld [vmem:[#allocation4 + $0xd0] sm:$0xff]
    %v60 = vld [vmem:[#allocation4 + $0xd8] sm:$0xff]
    %v61 = vld [vmem:[#allocation4 + $0xe0] sm:$0xff]
    %v62 = vld [vmem:[#allocation4 + $0xe8] sm:$0xff]
    %v63 = vld [vmem:[#allocation4 + $0xf0] sm:$0xff]
    %v64 = vld [vmem:[#allocation4 + $0xf8] sm:$0xff]
    %v65 = vstv %s31
    %v66 = vmul.f32 %v33, %v65
    %v67 = vmul.f32 %v34, %v65
    %v68 = vmul.f32 %v35, %v65
    %v69 = vmul.f32 %v36, %v65
    %v70 = vmul.f32 %v37, %v65
    %v71 = vmul.f32 %v38, %v65
    %v72 = vmul.f32 %v39, %v65
    %v73 = vmul.f32 %v40, %v65
    %v74 = vmul.f32 %v41, %v65
    %v75 = vmul.f32 %v42, %v65
    %v76 = vmul.f32 %v43, %v65
    %v77 = vmul.f32 %v44, %v65
    %v78 = vmul.f32 %v45, %v65
    %v79 = vmul.f32 %v46, %v65
    %v80 = vmul.f32 %v47, %v65
    %v81 = vmul.f32 %v48, %v65
    %v82 = vmul.f32 %v49, %v65
    %v83 = vmul.f32 %v50, %v65
    %v84 = vmul.f32 %v51, %v65
    %v85 = vmul.f32 %v52, %v65
    %v86 = vmul.f32 %v53, %v65
    %v87 = vmul.f32 %v54, %v65
    %v88 = vmul.f32 %v55, %v65
    %v89 = vmul.f32 %v56, %v65
    %v90 = vmul.f32 %v57, %v65
    %v91 = vmul.f32 %v58, %v65
    %v92 = vmul.f32 %v59, %v65
    %v93 = vmul.f32 %v60, %v65
    %v94 = vmul.f32 %v61, %v65
    %v95 = vmul.f32 %v62, %v65
    %v96 = vmul.f32 %v63, %v65
    %v97 = vmul.f32 %v64, %v65
    %v98 = vstv %s32
    %v99 = vadd.f32 %v66, %v98
    %v100 = vadd.f32 %v67, %v98
    %v101 = vadd.f32 %v68, %v98
    %v102 = vadd.f32 %v69, %v98
    %v103 = vadd.f32 %v70, %v98
    %v104 = vadd.f32 %v71, %v98
    %v105 = vadd.f32 %v72, %v98
    %v106 = vadd.f32 %v73, %v98
    %v107 = vadd.f32 %v74, %v98
    %v108 = vadd.f32 %v75, %v98
    %v109 = vadd.f32 %v76, %v98
    %v110 = vadd.f32 %v77, %v98
    %v111 = vadd.f32 %v78, %v98
    %v112 = vadd.f32 %v79, %v98
    %v113 = vadd.f32 %v80, %v98
    %v114 = vadd.f32 %v81, %v98
    %v115 = vadd.f32 %v82, %v98
    %v116 = vadd.f32 %v83, %v98
    %v117 = vadd.f32 %v84, %v98
    %v118 = vadd.f32 %v85, %v98
    %v119 = vadd.f32 %v86, %v98
    %v120 = vadd.f32 %v87, %v98
    %v121 = vadd.f32 %v88, %v98
    %v122 = vadd.f32 %v89, %v98
    %v123 = vadd.f32 %v90, %v98
    %v124 = vadd.f32 %v91, %v98
    %v125 = vadd.f32 %v92, %v98
    %v126 = vadd.f32 %v93, %v98
    %v127 = vadd.f32 %v94, %v98
    %v128 = vadd.f32 %v95, %v98
    %v129 = vadd.f32 %v96, %v98
    %v130 = vadd.f32 %v97, %v98
    %131 = vst [vmem:[#allocation7] sm:$0xff] %v99
    %132 = vst [vmem:[#allocation7 + $0x8] sm:$0xff] %v100
    %133 = vst [vmem:[#allocation7 + $0x10] sm:$0xff] %v101
    %134 = vst [vmem:[#allocation7 + $0x18] sm:$0xff] %v102
    %135 = vst [vmem:[#allocation7 + $0x20] sm:$0xff] %v103
    %136 = vst [vmem:[#allocation7 + $0x28] sm:$0xff] %v104
    %137 = vst [vmem:[#allocation7 + $0x30] sm:$0xff] %v105
    %138 = vst [vmem:[#allocation7 + $0x38] sm:$0xff] %v106
    %139 = vst [vmem:[#allocation7 + $0x40] sm:$0xff] %v107
    %140 = vst [vmem:[#allocation7 + $0x48] sm:$0xff] %v108
    %141 = vst [vmem:[#allocation7 + $0x50] sm:$0xff] %v109
    %142 = vst [vmem:[#allocation7 + $0x58] sm:$0xff] %v110
    %143 = vst [vmem:[#allocation7 + $0x60] sm:$0xff] %v111
    %144 = vst [vmem:[#allocation7 + $0x68] sm:$0xff] %v112
    %145 = vst [vmem:[#allocation7 + $0x70] sm:$0xff] %v113
    %146 = vst [vmem:[#allocation7 + $0x78] sm:$0xff] %v114
    %147 = vst [vmem:[#allocation7 + $0x80] sm:$0xff] %v115
    %148 = vst [vmem:[#allocation7 + $0x88] sm:$0xff] %v116
    %149 = vst [vmem:[#allocation7 + $0x90] sm:$0xff] %v117
    %150 = vst [vmem:[#allocation7 + $0x98] sm:$0xff] %v118
    %151 = vst [vmem:[#allocation7 + $0xa0] sm:$0xff] %v119
    %152 = vst [vmem:[#allocation7 + $0xa8] sm:$0xff] %v120
    %153 = vst [vmem:[#allocation7 + $0xb0] sm:$0xff] %v121
    %154 = vst [vmem:[#allocation7 + $0xb8] sm:$0xff] %v122
    %155 = vst [vmem:[#allocation7 + $0xc0] sm:$0xff] %v123
    %156 = vst [vmem:[#allocation7 + $0xc8] sm:$0xff] %v124
    %157 = vst [vmem:[#allocation7 + $0xd0] sm:$0xff] %v125
    %158 = vst [vmem:[#allocation7 + $0xd8] sm:$0xff] %v126
    %159 = vst [vmem:[#allocation7 + $0xe0] sm:$0xff] %v127
    %160 = vst [vmem:[#allocation7 + $0xe8] sm:$0xff] %v128
    %161 = vst [vmem:[#allocation7 + $0xf0] sm:$0xff] %v129
    %162 = vst [vmem:[#allocation7 + $0xf8] sm:$0xff] %v130
    // Predicated region
    $region18: #{tpu_custom_call.1} parent=1 // pred_check
      _
    $region19: #{tpu_custom_call.1} parent=1 // pred_check_branch
      %164 = sbr.rel (0) target = $region21
    $region20: #{tpu_custom_call.1} parent=1 // pred_region
      %s166 = ssub.s32 4096, 4096
      %167 = vsyncadd [#allocation6], %s166
      %s168 = sshll.u32 [#allocation7], 4
      %s169 = int_to_ptr.vmem [resolvable:$true] %s168
      %174 = dma.vmem_to_hbm [thread:$0]  %s169, 4096, %s3, [#allocation6], 128, 128, 8
    $region21: #{tpu_custom_call.1} parent=1 // pred_fallthru
      _
    // Predicated region
    $region22: #{tpu_custom_call.1} parent=1 // pred_check
      _
    $region23: #{tpu_custom_call.1} parent=1 // pred_check_branch
      %176 = sbr.rel (0) target = $region25
    $region24: #{tpu_custom_call.1} parent=1 // pred_region
      %177 = dma.done [#allocation6], 4096
    $region25: #{tpu_custom_call.1} parent=1 // pred_fallthru
      _
    %178 = vsyncpa [#allocation5], 1
    %179 = vsyncpa [#allocation6], 1

</llo_original>
